<compile_context>
chip_gen: v7x
topology: tpu7x:2x2x1
jax: 0.10.0
libtpu: 0.0.40
codegen_flags: <defaults>
</compile_context>

<pallas_src>
import jax
import jax.numpy as jnp
from jax.experimental import pallas as pl
from jax.experimental.pallas import tpu as pltpu

INPUT_SIZE = 988
HIDDEN1 = 128
HIDDEN2 = 64
HIDDEN2_PAD = 128       # lane-dense h2; padded cols are zeros
NUM_CLASSES = 6
OUT_PAD = 128           # lane-dense output; real logits live in cols [:6]
MAX_TILE_B_BF16 = 4096  # bf16 x: ~25 MiB VMEM incl. double-buffering
MAX_TILE_B_F32 = 2048   # f32  x: ~20 MiB VMEM incl. double-buffering
VMEM_LIMIT_BYTES = 48 * 1024 * 1024  # explicit scoped-VMEM limit (safe on v5e/v6e/v7x)


def _cdiv(a, b):
    return (a + b - 1) // b


def _round_up(x, m):
    return _cdiv(x, m) * m


def _choose_tile_b(batch, max_tile_b):
    """Balanced batch tile, multiple of 8, >= 2 tiles when batch allows (megacore)."""
    if batch <= 16:
        return _round_up(max(batch, 1), 8)          # single (possibly ragged) tile
    n_tiles = max(2, _cdiv(batch, max_tile_b))      # >= 2 grid steps for v7x's 2 TCs
    tb = _round_up(_cdiv(batch, n_tiles), 8)
    return min(tb, max_tile_b)


def ffnn_kernel(x_ref, w1_ref, b1_ref, w2_ref, b2_ref, w3_ref, b3_ref, o_ref):
    # x tile: (TILE_B, 988) in caller dtype; cast to bf16 in-register (no HBM pre-pass).
    x = x_ref[...].astype(w1_ref.dtype)

    # fc1 + ReLU: bf16 MXU inputs, f32 accumulation; bias/ReLU on the f32 VPU path.
    h1 = jnp.dot(x, w1_ref[...], preferred_element_type=jnp.float32)
    h1 = jnp.maximum(h1 + b1_ref[...], 0.0)

    # fc2 + ReLU (dropout p=0.5 is identity in eval/prediction mode).
    # Hidden2 is padded to 128 lanes; padded columns compute to exactly 0.
    h2 = jnp.dot(h1.astype(w2_ref.dtype), w2_ref[...], preferred_element_type=jnp.float32)
    h2 = jnp.maximum(h2 + b2_ref[...], 0.0)

    # fc3: output padded to 128 lanes so the store is a full, unmasked vst (bf16).
    y = jnp.dot(h2.astype(w3_ref.dtype), w3_ref[...], preferred_element_type=jnp.float32)
    o_ref[...] = (y + b3_ref[...]).astype(o_ref.dtype)


def prepare_params(params, compute_dtype=jnp.bfloat16):
    """One-time parameter prep (hoisted out of the per-call path).

    Pads hidden2 64->128 and output 6->128 with zeros, casts weights to bf16,
    keeps biases in f32 (VPU add path).
    """
    w1, b1, w2, b2, w3, b3 = params
    w1p = w1.astype(compute_dtype)                                            # (988, 128)
    b1p = jnp.asarray(b1, jnp.float32).reshape(1, HIDDEN1)
    w2p = (jnp.zeros((HIDDEN1, HIDDEN2_PAD), jnp.float32)
           .at[:, :HIDDEN2].set(w2).astype(compute_dtype))                    # (128, 128)
    b2p = jnp.zeros((1, HIDDEN2_PAD), jnp.float32).at[:, :HIDDEN2].set(
        jnp.asarray(b2, jnp.float32).reshape(1, HIDDEN2))
    w3p = (jnp.zeros((HIDDEN2_PAD, OUT_PAD), jnp.float32)
           .at[:HIDDEN2, :NUM_CLASSES].set(w3).astype(compute_dtype))         # (128, 128)
    b3p = jnp.zeros((1, OUT_PAD), jnp.float32).at[:, :NUM_CLASSES].set(
        jnp.asarray(b3, jnp.float32).reshape(1, NUM_CLASSES))
    return (w1p, b1p, w2p, b2p, w3p, b3p)


def feed_forward_nn(x, prepared_params, *, tile_b=None):
    """Runs the fused MLP.

    x: (batch, 988), float32 or bfloat16 (bf16 preferred -- halves the x HBM read).
    prepared_params: output of prepare_params().
    Returns (batch, 6) float32 logits.
    """
    w1p, b1p, w2p, b2p, w3p, b3p = prepared_params
    batch, feat = x.shape
    assert feat == INPUT_SIZE, f"expected {INPUT_SIZE} features, got {feat}"

    if tile_b is None:
        max_tile = MAX_TILE_B_BF16 if x.dtype == jnp.bfloat16 else MAX_TILE_B_F32
        tb = _choose_tile_b(batch, max_tile)
    else:
        tb = _round_up(max(min(tile_b, batch), 1), 8)

    grid = (_cdiv(batch, tb),)

    flops = 2 * batch * (INPUT_SIZE * HIDDEN1 + HIDDEN1 * HIDDEN2_PAD
                         + HIDDEN2_PAD * OUT_PAD)
    bytes_accessed = (
        batch * INPUT_SIZE * x.dtype.itemsize             # x read (no pre-pass)
        + w1p.size * 2 + w2p.size * 2 + w3p.size * 2      # bf16 weights
        + (HIDDEN1 + HIDDEN2_PAD + OUT_PAD) * 4           # f32 biases
        + batch * OUT_PAD * 2                             # bf16 output write
    )

    out = pl.pallas_call(
        ffnn_kernel,
        out_shape=jax.ShapeDtypeStruct((batch, OUT_PAD), jnp.bfloat16),
        grid_spec=pltpu.PrefetchScalarGridSpec(
            num_scalar_prefetch=0,
            grid=grid,
            in_specs=[
                pl.BlockSpec((tb, INPUT_SIZE), lambda i: (i, 0)),          # x (pipelined)
                pl.BlockSpec((INPUT_SIZE, HIDDEN1), lambda i: (0, 0)),     # W1 (resident)
                pl.BlockSpec((1, HIDDEN1), lambda i: (0, 0)),              # b1
                pl.BlockSpec((HIDDEN1, HIDDEN2_PAD), lambda i: (0, 0)),    # W2 (padded)
                pl.BlockSpec((1, HIDDEN2_PAD), lambda i: (0, 0)),          # b2 (padded)
                pl.BlockSpec((HIDDEN2_PAD, OUT_PAD), lambda i: (0, 0)),    # W3 (padded)
                pl.BlockSpec((1, OUT_PAD), lambda i: (0, 0)),              # b3 (padded)
            ],
            out_specs=pl.BlockSpec((tb, OUT_PAD), lambda i: (i, 0)),
        ),
        compiler_params=pltpu.CompilerParams(
            dimension_semantics=("parallel",),     # shards batch tiles across v7x's 2 TCs
            vmem_limit_bytes=VMEM_LIMIT_BYTES,     # avoid v5e's 16 MiB scoped-VMEM cliff
        ),
        cost_estimate=pl.CostEstimate(
            flops=flops, transcendentals=0, bytes_accessed=bytes_accessed),
    )(x, w1p, b1p, w2p, b2p, w3p, b3p)

    # Slice the 6 real logits; upcast to f32 for downstream consumers.
    return out[:, :NUM_CLASSES].astype(jnp.float32)


def init_params(key):
    """Deterministic init mimicking torch.nn.Linear.

    Weights stored as (in, out) == transpose of PyTorch's (out, in); biases (1, out).
    """
    k1, k2, k3, k4, k5, k6 = jax.random.split(key, 6)

    def linear_init(kw, kb, fan_in, fan_out):
        bound = 1.0 / jnp.sqrt(float(fan_in))
        w = jax.random.uniform(kw, (fan_in, fan_out), jnp.float32, -bound, bound)
        b = jax.random.uniform(kb, (1, fan_out), jnp.float32, -bound, bound)
        return w, b

    w1, b1 = linear_init(k1, k2, INPUT_SIZE, HIDDEN1)
    w2, b2 = linear_init(k3, k4, HIDDEN1, HIDDEN2)
    w3, b3 = linear_init(k5, k6, HIDDEN2, NUM_CLASSES)
    return (w1, b1, w2, b2, w3, b3)


def reference_forward(x, params):
    w1, b1, w2, b2, w3, b3 = params
    h1 = jnp.maximum(x @ w1 + b1, 0.0)
    h2 = jnp.maximum(h1 @ w2 + b2, 0.0)
    return h2 @ w3 + b3


if __name__ == "__main__":
    key = jax.random.PRNGKey(0)
    kx, kx2, kp = jax.random.split(key, 3)
    params = init_params(kp)
    prepared = prepare_params(params)   # one-time weight prep (hoisted out of calls)

    # Small-shape check (single ragged tile, batch < 8).
    batch = 2
    x = jax.random.normal(kx, (batch, INPUT_SIZE), dtype=jnp.float32)
    out = jax.block_until_ready(feed_forward_nn(x, prepared))
    ref = reference_forward(x, params)
    assert out.shape == (batch, NUM_CLASSES)
    # bf16 activations/weights/output with f32 accumulation -> loose tolerance.
    assert jnp.allclose(out, ref, atol=2e-2, rtol=2e-2)

    # Multi-tile check: batch not a multiple of the tile, exercises grid + ragged
    # last block and the bf16-input fast path.
    batch2 = 300
    x2 = jax.random.normal(kx2, (batch2, INPUT_SIZE), dtype=jnp.float32)
    out2 = jax.block_until_ready(feed_forward_nn(x2.astype(jnp.bfloat16), prepared))
    ref2 = reference_forward(x2, params)
    assert out2.shape == (batch2, NUM_CLASSES)
    assert jnp.allclose(out2, ref2, atol=3e-2, rtol=3e-2)

    print("KERNEL_OK")
</pallas_src>

<mosaic_0001>
module attributes {stable_mosaic.version = 11 : i64} {
  func.func @ffnn_kernel(%arg0: i32, %arg1: memref<8x988xf32, #tpu.memory_space<vmem>>, %arg2: memref<988x128xbf16, #tpu.memory_space<vmem>>, %arg3: memref<1x128xf32, #tpu.memory_space<vmem>>, %arg4: memref<128x128xbf16, #tpu.memory_space<vmem>>, %arg5: memref<1x128xf32, #tpu.memory_space<vmem>>, %arg6: memref<128x128xbf16, #tpu.memory_space<vmem>>, %arg7: memref<1x128xf32, #tpu.memory_space<vmem>>, %arg8: memref<8x128xbf16, #tpu.memory_space<vmem>>) attributes {dimension_semantics = [#tpu.dimension_semantics<parallel>], iteration_bounds = array<i64: 1>, scalar_prefetch = 0 : i64, scratch_operands = 0 : i64, tpu.core_type = #tpu.core_type<tc>, window_params = [{transform_indices = @transform_0, window_bounds = array<i64: 8, 988>}, {pipeline_mode = #tpu.pipeline_mode<synchronous>, transform_indices = @transform_1, window_bounds = array<i64: 988, 128>}, {pipeline_mode = #tpu.pipeline_mode<synchronous>, transform_indices = @transform_2, window_bounds = array<i64: 1, 128>}, {pipeline_mode = #tpu.pipeline_mode<synchronous>, transform_indices = @transform_3, window_bounds = array<i64: 128, 128>}, {pipeline_mode = #tpu.pipeline_mode<synchronous>, transform_indices = @transform_4, window_bounds = array<i64: 1, 128>}, {pipeline_mode = #tpu.pipeline_mode<synchronous>, transform_indices = @transform_5, window_bounds = array<i64: 128, 128>}, {pipeline_mode = #tpu.pipeline_mode<synchronous>, transform_indices = @transform_6, window_bounds = array<i64: 1, 128>}, {transform_indices = @transform_7, window_bounds = array<i64: 8, 128>}]} {
    %c0 = arith.constant 0 : index
    %c0_0 = arith.constant 0 : index
    %0 = vector.load %arg1[%c0, %c0_0] : memref<8x988xf32, #tpu.memory_space<vmem>>, vector<8x988xf32>
    %1 = arith.truncf %0 : vector<8x988xf32> to vector<8x988xbf16>
    %c0_1 = arith.constant 0 : index
    %c0_2 = arith.constant 0 : index
    %2 = vector.load %arg2[%c0_1, %c0_2] : memref<988x128xbf16, #tpu.memory_space<vmem>>, vector<988x128xbf16>
    %cst = arith.constant dense<0.000000e+00> : vector<8x128xf32>
    %3 = tpu.matmul %1, %2, %cst {dimension_numbers = #tpu.dot_dimension_numbers<[1], [0], [0], [1], [0, 0, 1, 1], [], []>} : vector<8x988xbf16>, vector<988x128xbf16>, vector<8x128xf32> -> vector<8x128xf32>
    %c0_3 = arith.constant 0 : index
    %c0_4 = arith.constant 0 : index
    %4 = vector.load %arg3[%c0_3, %c0_4] : memref<1x128xf32, #tpu.memory_space<vmem>>, vector<1x128xf32>
    %5 = vector.broadcast %4 : vector<1x128xf32> to vector<8x128xf32>
    %6 = arith.addf %3, %5 : vector<8x128xf32>
    %cst_5 = arith.constant 0.000000e+00 : f32
    %7 = vector.broadcast %cst_5 : f32 to vector<8x128xf32>
    %8 = arith.maximumf %6, %7 : vector<8x128xf32>
    %9 = arith.truncf %8 : vector<8x128xf32> to vector<8x128xbf16>
    %c0_6 = arith.constant 0 : index
    %c0_7 = arith.constant 0 : index
    %10 = vector.load %arg4[%c0_6, %c0_7] : memref<128x128xbf16, #tpu.memory_space<vmem>>, vector<128x128xbf16>
    %cst_8 = arith.constant dense<0.000000e+00> : vector<8x128xf32>
    %11 = tpu.matmul %9, %10, %cst_8 {dimension_numbers = #tpu.dot_dimension_numbers<[1], [0], [0], [1], [0, 0, 1, 1], [], []>} : vector<8x128xbf16>, vector<128x128xbf16>, vector<8x128xf32> -> vector<8x128xf32>
    %c0_9 = arith.constant 0 : index
    %c0_10 = arith.constant 0 : index
    %12 = vector.load %arg5[%c0_9, %c0_10] : memref<1x128xf32, #tpu.memory_space<vmem>>, vector<1x128xf32>
    %13 = vector.broadcast %12 : vector<1x128xf32> to vector<8x128xf32>
    %14 = arith.addf %11, %13 : vector<8x128xf32>
    %cst_11 = arith.constant 0.000000e+00 : f32
    %15 = vector.broadcast %cst_11 : f32 to vector<8x128xf32>
    %16 = arith.maximumf %14, %15 : vector<8x128xf32>
    %17 = arith.truncf %16 : vector<8x128xf32> to vector<8x128xbf16>
    %c0_12 = arith.constant 0 : index
    %c0_13 = arith.constant 0 : index
    %18 = vector.load %arg6[%c0_12, %c0_13] : memref<128x128xbf16, #tpu.memory_space<vmem>>, vector<128x128xbf16>
    %cst_14 = arith.constant dense<0.000000e+00> : vector<8x128xf32>
    %19 = tpu.matmul %17, %18, %cst_14 {dimension_numbers = #tpu.dot_dimension_numbers<[1], [0], [0], [1], [0, 0, 1, 1], [], []>} : vector<8x128xbf16>, vector<128x128xbf16>, vector<8x128xf32> -> vector<8x128xf32>
    %c0_15 = arith.constant 0 : index
    %c0_16 = arith.constant 0 : index
    %20 = vector.load %arg7[%c0_15, %c0_16] : memref<1x128xf32, #tpu.memory_space<vmem>>, vector<1x128xf32>
    %21 = vector.broadcast %20 : vector<1x128xf32> to vector<8x128xf32>
    %22 = arith.addf %19, %21 : vector<8x128xf32>
    %23 = arith.truncf %22 : vector<8x128xf32> to vector<8x128xbf16>
    %c0_17 = arith.constant 0 : index
    %c0_18 = arith.constant 0 : index
    %24 = vector.load %arg8[%c0_17, %c0_18] : memref<8x128xbf16, #tpu.memory_space<vmem>>, vector<8x128xbf16>
    tpu.vector_store %arg8[%c0_17, %c0_18], %23 {strides = array<i32>} : memref<8x128xbf16, #tpu.memory_space<vmem>>, vector<8x128xbf16>,
    return
  }
  func.func @transform_0(%arg0: i32) -> (i32, i32) {
    %c0_i32 = arith.constant 0 : i32
    %c0_i32_0 = arith.constant 0 : i32
    return %arg0, %c0_i32 : i32, i32
  }
  func.func @transform_1(%arg0: i32) -> (i32, i32) {
    %c0_i32 = arith.constant 0 : i32
    %c0_i32_0 = arith.constant 0 : i32
    %c0_i32_1 = arith.constant 0 : i32
    return %c0_i32, %c0_i32_0 : i32, i32
  }
  func.func @transform_2(%arg0: i32) -> (i32, i32) {
    %c0_i32 = arith.constant 0 : i32
    %c0_i32_0 = arith.constant 0 : i32
    %c0_i32_1 = arith.constant 0 : i32
    return %c0_i32, %c0_i32_0 : i32, i32
  }
  func.func @transform_3(%arg0: i32) -> (i32, i32) {
    %c0_i32 = arith.constant 0 : i32
    %c0_i32_0 = arith.constant 0 : i32
    %c0_i32_1 = arith.constant 0 : i32
    return %c0_i32, %c0_i32_0 : i32, i32
  }
  func.func @transform_4(%arg0: i32) -> (i32, i32) {
    %c0_i32 = arith.constant 0 : i32
    %c0_i32_0 = arith.constant 0 : i32
    %c0_i32_1 = arith.constant 0 : i32
    return %c0_i32, %c0_i32_0 : i32, i32
  }
  func.func @transform_5(%arg0: i32) -> (i32, i32) {
    %c0_i32 = arith.constant 0 : i32
    %c0_i32_0 = arith.constant 0 : i32
    %c0_i32_1 = arith.constant 0 : i32
    return %c0_i32, %c0_i32_0 : i32, i32
  }
  func.func @transform_6(%arg0: i32) -> (i32, i32) {
    %c0_i32 = arith.constant 0 : i32
    %c0_i32_0 = arith.constant 0 : i32
    %c0_i32_1 = arith.constant 0 : i32
    return %c0_i32, %c0_i32_0 : i32, i32
  }
  func.func @transform_7(%arg0: i32) -> (i32, i32) {
    %c0_i32 = arith.constant 0 : i32
    %c0_i32_0 = arith.constant 0 : i32
    return %arg0, %c0_i32 : i32, i32
  }
}

</mosaic_0001>

<llo_original>
// kernel: tpu_custom_call.1
$region0: #{tpu_custom_call.1}
  #allocation0 [shape = 'u32[]', space=smem, size = 0x4, offset = 0x4, fixed_abs, tag = 'smem constant byte address 0x4 - core index']
  #allocation1 [shape = 'u32[144,128]{1,0:T(1,128)}', space=vmem, size = 0x12000, scoped, tag = 'internal scratch']
  %s0 = inlined_call_operand.hbm [shape: f32[2,988], index: 0, kind: input, shape index: {}]
  %s1 = inlined_call_operand.hbm [shape: bf16[988,128], index: 1, kind: input, shape index: {}]
  %s2 = inlined_call_operand.vmem [shape: f32[1,128], index: 2, kind: input, shape index: {}]
  %s3 = inlined_call_operand.hbm [shape: bf16[128,128], index: 3, kind: input, shape index: {}]
  %s4 = inlined_call_operand.vmem [shape: f32[1,128], index: 4, kind: input, shape index: {}]
  %s5 = inlined_call_operand.hbm [shape: bf16[128,128], index: 5, kind: input, shape index: {}]
  %s6 = inlined_call_operand.vmem [shape: f32[1,128], index: 6, kind: input, shape index: {}]
  %s7 = inlined_call_operand.hbm [shape: bf16[2,128], index: 7, kind: output, shape index: {}]
  %s8 = sld [smem:[#allocation0]]
  $region54: #{tpu_custom_call.1} parent=0
    _
  %s10 = ssub.s32 1, %s8
  %s11 = scalar_select 0, %s10, %s8
  $region1: #{tpu_custom_call.1} parent=0
    #allocation2 [shape = 'u8[32768]{0}', space=vmem, size = 0x8000, scoped, tag = 'input window, operand 0, single buffered']
    #allocation3 [shape = 's32[1]{0}', space=sflag, size = 0x4, scoped, tag = 'scoped memory for tpu_custom_call.1']
    #allocation4 [shape = 's32[1]{0}', space=sflag, size = 0x4, scoped, tag = 'scoped memory for tpu_custom_call.1']
    #allocation5 [shape = 'u8[253952]{0}', space=vmem, size = 0x3e000, scoped, tag = 'input window, operand 1, single buffered']
    #allocation6 [shape = 's32[1]{0}', space=sflag, size = 0x4, scoped, tag = 'scoped memory for tpu_custom_call.1']
    #allocation7 [shape = 'u8[32768]{0}', space=vmem, size = 0x8000, scoped, tag = 'input window, operand 3, single buffered']
    #allocation8 [shape = 'u8[32768]{0}', space=vmem, size = 0x8000, scoped, tag = 'input window, operand 5, single buffered']
    #allocation9 [shape = 's32[1]{0}', space=sflag, size = 0x4, scoped, tag = 'scoped memory for tpu_custom_call.1']
    #allocation10 [shape = 'u8[2048]{0}', space=vmem, size = 0x800, scoped, tag = 'output window, operand 0, single buffered']
    %12 = vsyncpa [#allocation3], 0
    %13 = vsyncpa [#allocation6], 0
    %14 = vsyncpa [#allocation9], 0
    %15 = vsyncpa [#allocation4], 0
    // Predicated region
    $region2: #{tpu_custom_call.1} parent=1 // pred_check
      _
    $region3: #{tpu_custom_call.1} parent=1 // pred_check_branch
      %17 = sbr.rel (0) target = $region5
    $region4: #{tpu_custom_call.1} parent=1 // pred_region
      %s19 = ssub.s32 1024, 256
      %20 = vsyncadd [#allocation3], %s19
      %s21 = sshll.u32 [#allocation2], 4
      %s22 = int_to_ptr.vmem [resolvable:$true] %s21
      %27 = dma.hbm_to_vmem [thread:$0]  %s0, 256, %s22, [#allocation3], 256, 256, 16
    $region5: #{tpu_custom_call.1} parent=1 // pred_fallthru
      _
    // Predicated region
    $region6: #{tpu_custom_call.1} parent=1 // pred_check
      _
    $region7: #{tpu_custom_call.1} parent=1 // pred_check_branch
      %29 = sbr.rel (0) target = $region9
    $region8: #{tpu_custom_call.1} parent=1 // pred_region
      %s31 = ssub.s32 7936, 7936
      %32 = vsyncadd [#allocation6], %s31
      %s33 = sshll.u32 [#allocation5], 4
      %s34 = int_to_ptr.vmem [resolvable:$true] %s33
      %39 = dma.hbm_to_vmem [thread:$0]  %s1, 7936, %s34, [#allocation6], 64, 64, 4
    $region9: #{tpu_custom_call.1} parent=1 // pred_fallthru
      _
    // Predicated region
    $region10: #{tpu_custom_call.1} parent=1 // pred_check
      _
    $region11: #{tpu_custom_call.1} parent=1 // pred_check_branch
      %41 = sbr.rel (0) target = $region13
    $region12: #{tpu_custom_call.1} parent=1 // pred_region
      _
    $region13: #{tpu_custom_call.1} parent=1 // pred_fallthru
      _
    // Predicated region
    $region14: #{tpu_custom_call.1} parent=1 // pred_check
      _
    $region15: #{tpu_custom_call.1} parent=1 // pred_check_branch
      %43 = sbr.rel (0) target = $region17
    $region16: #{tpu_custom_call.1} parent=1 // pred_region
      %s45 = ssub.s32 1024, 1024
      %46 = vsyncadd [#allocation6], %s45
      %s47 = sshll.u32 [#allocation7], 4
      %s48 = int_to_ptr.vmem [resolvable:$true] %s47
      %53 = dma.hbm_to_vmem [thread:$0]  %s3, 1024, %s48, [#allocation6], 64, 64, 4
    $region17: #{tpu_custom_call.1} parent=1 // pred_fallthru
      _
    // Predicated region
    $region18: #{tpu_custom_call.1} parent=1 // pred_check
      _
    $region19: #{tpu_custom_call.1} parent=1 // pred_check_branch
      %55 = sbr.rel (0) target = $region21
    $region20: #{tpu_custom_call.1} parent=1 // pred_region
      _
    $region21: #{tpu_custom_call.1} parent=1 // pred_fallthru
      _
    // Predicated region
    $region22: #{tpu_custom_call.1} parent=1 // pred_check
      _
    $region23: #{tpu_custom_call.1} parent=1 // pred_check_branch
      %57 = sbr.rel (0) target = $region25
    $region24: #{tpu_custom_call.1} parent=1 // pred_region
      %s59 = ssub.s32 1024, 1024
      %60 = vsyncadd [#allocation9], %s59
      %s61 = sshll.u32 [#allocation8], 4
      %s62 = int_to_ptr.vmem [resolvable:$true] %s61
      %67 = dma.hbm_to_vmem [thread:$0]  %s5, 1024, %s62, [#allocation9], 64, 64, 4
    $region25: #{tpu_custom_call.1} parent=1 // pred_fallthru
      _
    // Predicated region
    $region26: #{tpu_custom_call.1} parent=1 // pred_check
      _
    $region27: #{tpu_custom_call.1} parent=1 // pred_check_branch
      %69 = sbr.rel (0) target = $region29
    $region28: #{tpu_custom_call.1} parent=1 // pred_region
      _
    $region29: #{tpu_custom_call.1} parent=1 // pred_fallthru
      _
    // Predicated region
    $region30: #{tpu_custom_call.1} parent=1 // pred_check
      _
    $region31: #{tpu_custom_call.1} parent=1 // pred_check_branch
      %71 = sbr.rel (0) target = $region33
    $region32: #{tpu_custom_call.1} parent=1 // pred_region
      %72 = dma.done [#allocation3], 1024
    $region33: #{tpu_custom_call.1} parent=1 // pred_fallthru
      _
    // Predicated region
    $region34: #{tpu_custom_call.1} parent=1 // pred_check
      _
    $region35: #{tpu_custom_call.1} parent=1 // pred_check_branch
      %74 = sbr.rel (0) target = $region37
    $region36: #{tpu_custom_call.1} parent=1 // pred_region
      %75 = dma.done [#allocation6], 7936
    $region37: #{tpu_custom_call.1} parent=1 // pred_fallthru
      _
    // Predicated region
    $region38: #{tpu_custom_call.1} parent=1 // pred_check
      _
    $region39: #{tpu_custom_call.1} parent=1 // pred_check_branch
      %77 = sbr.rel (0) target = $region41
    $region40: #{tpu_custom_call.1} parent=1 // pred_region
      %78 = dma.done [#allocation6], 1024
    $region41: #{tpu_custom_call.1} parent=1 // pred_fallthru
      _
    // Predicated region
    $region42: #{tpu_custom_call.1} parent=1 // pred_check
      _
    $region43: #{tpu_custom_call.1} parent=1 // pred_check_branch
      %80 = sbr.rel (0) target = $region45
    $region44: #{tpu_custom_call.1} parent=1 // pred_region
      %81 = dma.done [#allocation9], 1024
    $region45: #{tpu_custom_call.1} parent=1 // pred_fallthru
      _
    %v83 = vld [vmem:[#allocation2] sm:$0xff]
    %v84 = vld [vmem:[#allocation2 + $0x8] sm:$0xff]
    %v85 = vld [vmem:[#allocation2 + $0x10] sm:$0xff]
    %v86 = vld [vmem:[#allocation2 + $0x18] sm:$0xff]
    %v87 = vld [vmem:[#allocation2 + $0x20] sm:$0xff]
    %v88 = vld [vmem:[#allocation2 + $0x28] sm:$0xff]
    %v89 = vld [vmem:[#allocation2 + $0x30] sm:$0xff]
    %v90 = vld [vmem:[#allocation2 + $0x38] sm:$0xff]
    %v99 = vcombine.low %v83, %v85
    %v100 = vcombine.high %v83, %v85
    %v101 = vcombine.low %v87, %v89
    %v102 = vcombine.high %v87, %v89
    %v104 = vunpack.c.l.s4 1983009808
    %v105 = vunpack.c.0.s8 %v104
    %v106 = vlaneseq
    %v107 = vshrl.u32 %v106, 7
    %v108 = vsub.s32 %v105, %v107
    %v109 = vrot.slane %v99, %v108
    %v111 = vunpack.c.l.s4 1983009808
    %v112 = vunpack.c.0.s8 %v111
    %v113 = vlaneseq
    %v114 = vshrl.u32 %v113, 7
    %v115 = vsub.s32 %v112, %v114
    %v116 = vrot.slane %v100, %v115
    %v118 = vunpack.c.l.s4 1983009808
    %v119 = vunpack.c.0.s8 %v118
    %v120 = vlaneseq
    %v121 = vshrl.u32 %v120, 7
    %v122 = vsub.s32 %v119, %v121
    %v123 = vrot.slane %v101, %v122
    %v125 = vunpack.c.l.s4 1983009808
    %v126 = vunpack.c.0.s8 %v125
    %v127 = vlaneseq
    %v128 = vshrl.u32 %v127, 7
    %v129 = vsub.s32 %v126, %v128
    %v130 = vrot.slane %v102, %v129
    %v131 = vcombine.low %v109, %v123
    %v132 = vcombine.high %v109, %v123
    %v133 = vcombine.low %v116, %v130
    %v134 = vcombine.high %v116, %v130
    %v135 = vcombine.low %v84, %v86
    %v136 = vcombine.high %v84, %v86
    %v137 = vcombine.low %v88, %v90
    %v138 = vcombine.high %v88, %v90
    %v140 = vunpack.c.l.s4 1983009808
    %v141 = vunpack.c.0.s8 %v140
    %v142 = vlaneseq
    %v143 = vshrl.u32 %v142, 7
    %v144 = vsub.s32 %v141, %v143
    %v145 = vrot.slane %v135, %v144
    %v147 = vunpack.c.l.s4 1983009808
    %v148 = vunpack.c.0.s8 %v147
    %v149 = vlaneseq
    %v150 = vshrl.u32 %v149, 7
    %v151 = vsub.s32 %v148, %v150
    %v152 = vrot.slane %v136, %v151
    %v154 = vunpack.c.l.s4 1983009808
    %v155 = vunpack.c.0.s8 %v154
    %v156 = vlaneseq
    %v157 = vshrl.u32 %v156, 7
    %v158 = vsub.s32 %v155, %v157
    %v159 = vrot.slane %v137, %v158
    %v161 = vunpack.c.l.s4 1983009808
    %v162 = vunpack.c.0.s8 %v161
    %v163 = vlaneseq
    %v164 = vshrl.u32 %v163, 7
    %v165 = vsub.s32 %v162, %v164
    %v166 = vrot.slane %v138, %v165
    %v167 = vcombine.low %v145, %v159
    %v168 = vcombine.high %v145, %v159
    %v169 = vcombine.low %v152, %v166
    %v170 = vcombine.high %v152, %v166
    %v179 = vpack.c.bf16 %v131, %v131
    %v180 = vpack.c.bf16 %v132, %v132
    %v181 = vpack.c.bf16 %v133, %v133
    %v182 = vpack.c.bf16 %v134, %v134
    %v183 = vpack.c.bf16 %v167, %v167
    %v184 = vpack.c.bf16 %v168, %v168
    %v185 = vpack.c.bf16 %v169, %v169
    %v186 = vpack.c.bf16 %v170, %v170
    %v187 = vld [vmem:[#allocation5] sm:$0xf]
    %v188 = vld [vmem:[#allocation5 + $0x4] sm:$0xf]
    %v189 = vld [vmem:[#allocation5 + $0x8] sm:$0xf]
    %v190 = vld [vmem:[#allocation5 + $0xc] sm:$0xf]
    %v191 = vld [vmem:[#allocation5 + $0x10] sm:$0xf]
    %v192 = vld [vmem:[#allocation5 + $0x14] sm:$0xf]
    %v193 = vld [vmem:[#allocation5 + $0x18] sm:$0xf]
    %v194 = vld [vmem:[#allocation5 + $0x1c] sm:$0xf]
    %v195 = vld [vmem:[#allocation5 + $0x20] sm:$0xf]
    %v196 = vld [vmem:[#allocation5 + $0x24] sm:$0xf]
    %v197 = vld [vmem:[#allocation5 + $0x28] sm:$0xf]
    %v198 = vld [vmem:[#allocation5 + $0x2c] sm:$0xf]
    %v199 = vld [vmem:[#allocation5 + $0x30] sm:$0xf]
    %v200 = vld [vmem:[#allocation5 + $0x34] sm:$0xf]
    %v201 = vld [vmem:[#allocation5 + $0x38] sm:$0xf]
    %v202 = vld [vmem:[#allocation5 + $0x3c] sm:$0xf]
    %v203 = vld [vmem:[#allocation5 + $0x40] sm:$0xf]
    %v204 = vld [vmem:[#allocation5 + $0x44] sm:$0xf]
    %v205 = vld [vmem:[#allocation5 + $0x48] sm:$0xf]
    %v206 = vld [vmem:[#allocation5 + $0x4c] sm:$0xf]
    %v207 = vld [vmem:[#allocation5 + $0x50] sm:$0xf]
    %v208 = vld [vmem:[#allocation5 + $0x54] sm:$0xf]
    %v209 = vld [vmem:[#allocation5 + $0x58] sm:$0xf]
    %v210 = vld [vmem:[#allocation5 + $0x5c] sm:$0xf]
    %v211 = vld [vmem:[#allocation5 + $0x60] sm:$0xf]
    %v212 = vld [vmem:[#allocation5 + $0x64] sm:$0xf]
    %v213 = vld [vmem:[#allocation5 + $0x68] sm:$0xf]
    %v214 = vld [vmem:[#allocation5 + $0x6c] sm:$0xf]
    %v215 = vld [vmem:[#allocation5 + $0x70] sm:$0xf]
    %v216 = vld [vmem:[#allocation5 + $0x74] sm:$0xf]
    %v217 = vld [vmem:[#allocation5 + $0x78] sm:$0xf]
    %v218 = vld [vmem:[#allocation5 + $0x7c] sm:$0xf]
    %v219 = vld [vmem:[#allocation5 + $0x80] sm:$0xf]
    %v220 = vld [vmem:[#allocation5 + $0x84] sm:$0xf]
    %v221 = vld [vmem:[#allocation5 + $0x88] sm:$0xf]
    %v222 = vld [vmem:[#allocation5 + $0x8c] sm:$0xf]
    %v223 = vld [vmem:[#allocation5 + $0x90] sm:$0xf]
    %v224 = vld [vmem:[#allocation5 + $0x94] sm:$0xf]
    %v225 = vld [vmem:[#allocation5 + $0x98] sm:$0xf]
    %v226 = vld [vmem:[#allocation5 + $0x9c] sm:$0xf]
    %v227 = vld [vmem:[#allocation5 + $0xa0] sm:$0xf]
    %v228 = vld [vmem:[#allocation5 + $0xa4] sm:$0xf]
    %v229 = vld [vmem:[#allocation5 + $0xa8] sm:$0xf]
    %v230 = vld [vmem:[#allocation5 + $0xac] sm:$0xf]
    %v231 = vld [vmem:[#allocation5 + $0xb0] sm:$0xf]
    %v232 = vld [vmem:[#allocation5 + $0xb4] sm:$0xf]
    %v233 = vld [vmem:[#allocation5 + $0xb8] sm:$0xf]
    %v234 = vld [vmem:[#allocation5 + $0xbc] sm:$0xf]
    %v235 = vld [vmem:[#allocation5 + $0xc0] sm:$0xf]
    %v236 = vld [vmem:[#allocation5 + $0xc4] sm:$0xf]
    %v237 = vld [vmem:[#allocation5 + $0xc8] sm:$0xf]
    %v238 = vld [vmem:[#allocation5 + $0xcc] sm:$0xf]
    %v239 = vld [vmem:[#allocation5 + $0xd0] sm:$0xf]
    %v240 = vld [vmem:[#allocation5 + $0xd4] sm:$0xf]
    %v241 = vld [vmem:[#allocation5 + $0xd8] sm:$0xf]
    %v242 = vld [vmem:[#allocation5 + $0xdc] sm:$0xf]
    %v243 = vld [vmem:[#allocation5 + $0xe0] sm:$0xf]
    %v244 = vld [vmem:[#allocation5 + $0xe4] sm:$0xf]
    %v245 = vld [vmem:[#allocation5 + $0xe8] sm:$0xf]
    %v246 = vld [vmem:[#allocation5 + $0xec] sm:$0xf]
    %v247 = vld [vmem:[#allocation5 + $0xf0] sm:$0xf]
    %v248 = vld [vmem:[#allocation5 + $0xf4] sm:$0xf]
    %v249 = vld [vmem:[#allocation5 + $0xf8] sm:$0xf]
    %v250 = vld [vmem:[#allocation5 + $0xfc] sm:$0xf]
    %v251 = vld [vmem:[#allocation5 + $0x100] sm:$0xf]
    %v252 = vld [vmem:[#allocation5 + $0x104] sm:$0xf]
    %v253 = vld [vmem:[#allocation5 + $0x108] sm:$0xf]
    %v254 = vld [vmem:[#allocation5 + $0x10c] sm:$0xf]
    %v255 = vld [vmem:[#allocation5 + $0x110] sm:$0xf]
    %v256 = vld [vmem:[#allocation5 + $0x114] sm:$0xf]
    %v257 = vld [vmem:[#allocation5 + $0x118] sm:$0xf]
    %v258 = vld [vmem:[#allocation5 + $0x11c] sm:$0xf]
    %v259 = vld [vmem:[#allocation5 + $0x120] sm:$0xf]
    %v260 = vld [vmem:[#allocation5 + $0x124] sm:$0xf]
    %v261 = vld [vmem:[#allocation5 + $0x128] sm:$0xf]
    %v262 = vld [vmem:[#allocation5 + $0x12c] sm:$0xf]
    %v263 = vld [vmem:[#allocation5 + $0x130] sm:$0xf]
    %v264 = vld [vmem:[#allocation5 + $0x134] sm:$0xf]
    %v265 = vld [vmem:[#allocation5 + $0x138] sm:$0xf]
    %v266 = vld [vmem:[#allocation5 + $0x13c] sm:$0xf]
    %v267 = vld [vmem:[#allocation5 + $0x140] sm:$0xf]
    %v268 = vld [vmem:[#allocation5 + $0x144] sm:$0xf]
    %v269 = vld [vmem:[#allocation5 + $0x148] sm:$0xf]
    %v270 = vld [vmem:[#allocation5 + $0x14c] sm:$0xf]
    %v271 = vld [vmem:[#allocation5 + $0x150] sm:$0xf]
    %v272 = vld [vmem:[#allocation5 + $0x154] sm:$0xf]
    %v273 = vld [vmem:[#allocation5 + $0x158] sm:$0xf]
    %v274 = vld [vmem:[#allocation5 + $0x15c] sm:$0xf]
    %v275 = vld [vmem:[#allocation5 + $0x160] sm:$0xf]
    %v276 = vld [vmem:[#allocation5 + $0x164] sm:$0xf]
    %v277 = vld [vmem:[#allocation5 + $0x168] sm:$0xf]
    %v278 = vld [vmem:[#allocation5 + $0x16c] sm:$0xf]
    %v279 = vld [vmem:[#allocation5 + $0x170] sm:$0xf]
    %v280 = vld [vmem:[#allocation5 + $0x174] sm:$0xf]
    %v281 = vld [vmem:[#allocation5 + $0x178] sm:$0xf]
    %v282 = vld [vmem:[#allocation5 + $0x17c] sm:$0xf]
    %v283 = vld [vmem:[#allocation5 + $0x180] sm:$0xf]
    %v284 = vld [vmem:[#allocation5 + $0x184] sm:$0xf]
    %v285 = vld [vmem:[#allocation5 + $0x188] sm:$0xf]
    %v286 = vld [vmem:[#allocation5 + $0x18c] sm:$0xf]
    %v287 = vld [vmem:[#allocation5 + $0x190] sm:$0xf]
    %v288 = vld [vmem:[#allocation5 + $0x194] sm:$0xf]
    %v289 = vld [vmem:[#allocation5 + $0x198] sm:$0xf]
    %v290 = vld [vmem:[#allocation5 + $0x19c] sm:$0xf]
    %v291 = vld [vmem:[#allocation5 + $0x1a0] sm:$0xf]
    %v292 = vld [vmem:[#allocation5 + $0x1a4] sm:$0xf]
    %v293 = vld [vmem:[#allocation5 + $0x1a8] sm:$0xf]
    %v294 = vld [vmem:[#allocation5 + $0x1ac] sm:$0xf]
    %v295 = vld [vmem:[#allocation5 + $0x1b0] sm:$0xf]
    %v296 = vld [vmem:[#allocation5 + $0x1b4] sm:$0xf]
    %v297 = vld [vmem:[#allocation5 + $0x1b8] sm:$0xf]
    %v298 = vld [vmem:[#allocation5 + $0x1bc] sm:$0xf]
    %v299 = vld [vmem:[#allocation5 + $0x1c0] sm:$0xf]
    %v300 = vld [vmem:[#allocation5 + $0x1c4] sm:$0xf]
    %v301 = vld [vmem:[#allocation5 + $0x1c8] sm:$0xf]
    %v302 = vld [vmem:[#allocation5 + $0x1cc] sm:$0xf]
    %v303 = vld [vmem:[#allocation5 + $0x1d0] sm:$0xf]
    %v304 = vld [vmem:[#allocation5 + $0x1d4] sm:$0xf]
    %v305 = vld [vmem:[#allocation5 + $0x1d8] sm:$0xf]
    %v306 = vld [vmem:[#allocation5 + $0x1dc] sm:$0xf]
    %v307 = vld [vmem:[#allocation5 + $0x1e0] sm:$0xf]
    %v308 = vld [vmem:[#allocation5 + $0x1e4] sm:$0xf]
    %v309 = vld [vmem:[#allocation5 + $0x1e8] sm:$0xf]
    %v310 = vld [vmem:[#allocation5 + $0x1ec] sm:$0x3]
    %v311 = vld [vmem:[%s2] sm:$0x1]
    %v313 = vlaneseq
    %v314 = vshrl.u32 %v313, 7
    %v315 = vsub.s32 0, %v314
    %v316 = vrot.slane %v311, %v315
    %v442 = vunpack.c.l.b16 %v187
    %v443 = vunpack.c.l.b16 %v188
    %v444 = vunpack.c.l.b16 %v189
    %v445 = vunpack.c.l.b16 %v190
    %v446 = vunpack.c.l.b16 %v191
    %v447 = vunpack.c.l.b16 %v192
    %v448 = vunpack.c.l.b16 %v193
    %v449 = vunpack.c.l.b16 %v194
    %v450 = vunpack.c.l.b16 %v195
    %v451 = vunpack.c.l.b16 %v196
    %v452 = vunpack.c.l.b16 %v197
    %v453 = vunpack.c.l.b16 %v198
    %v454 = vunpack.c.l.b16 %v199
    %v455 = vunpack.c.l.b16 %v200
    %v456 = vunpack.c.l.b16 %v201
    %v457 = vunpack.c.l.b16 %v202
    %v458 = vunpack.c.l.b16 %v203
    %v459 = vunpack.c.l.b16 %v204
    %v460 = vunpack.c.l.b16 %v205
    %v461 = vunpack.c.l.b16 %v206
    %v462 = vunpack.c.l.b16 %v207
    %v463 = vunpack.c.l.b16 %v208
    %v464 = vunpack.c.l.b16 %v209
    %v465 = vunpack.c.l.b16 %v210
    %v466 = vunpack.c.l.b16 %v211
    %v467 = vunpack.c.l.b16 %v212
    %v468 = vunpack.c.l.b16 %v213
    %v469 = vunpack.c.l.b16 %v214
    %v470 = vunpack.c.l.b16 %v215
    %v471 = vunpack.c.l.b16 %v216
    %v472 = vunpack.c.l.b16 %v217
    %v473 = vunpack.c.l.b16 %v218
    %v474 = vunpack.c.l.b16 %v219
    %v475 = vunpack.c.l.b16 %v220
    %v476 = vunpack.c.l.b16 %v221
    %v477 = vunpack.c.l.b16 %v222
    %v478 = vunpack.c.l.b16 %v223
    %v479 = vunpack.c.l.b16 %v224
    %v480 = vunpack.c.l.b16 %v225
    %v481 = vunpack.c.l.b16 %v226
    %v482 = vunpack.c.l.b16 %v227
    %v483 = vunpack.c.l.b16 %v228
    %v484 = vunpack.c.l.b16 %v229
    %v485 = vunpack.c.l.b16 %v230
    %v486 = vunpack.c.l.b16 %v231
    %v487 = vunpack.c.l.b16 %v232
    %v488 = vunpack.c.l.b16 %v233
    %v489 = vunpack.c.l.b16 %v234
    %v490 = vunpack.c.l.b16 %v235
    %v491 = vunpack.c.l.b16 %v236
    %v492 = vunpack.c.l.b16 %v237
    %v493 = vunpack.c.l.b16 %v238
    %v494 = vunpack.c.l.b16 %v239
    %v495 = vunpack.c.l.b16 %v240
    %v496 = vunpack.c.l.b16 %v241
    %v497 = vunpack.c.l.b16 %v242
    %v498 = vunpack.c.l.b16 %v243
    %v499 = vunpack.c.l.b16 %v244
    %v500 = vunpack.c.l.b16 %v245
    %v501 = vunpack.c.l.b16 %v246
    %v502 = vunpack.c.l.b16 %v247
    %v503 = vunpack.c.l.b16 %v248
    %v504 = vunpack.c.l.b16 %v249
    %v505 = vunpack.c.l.b16 %v250
    %v506 = vunpack.c.l.b16 %v251
    %v507 = vunpack.c.l.b16 %v252
    %v508 = vunpack.c.l.b16 %v253
    %v509 = vunpack.c.l.b16 %v254
    %v510 = vunpack.c.l.b16 %v255
    %v511 = vunpack.c.l.b16 %v256
    %v512 = vunpack.c.l.b16 %v257
    %v513 = vunpack.c.l.b16 %v258
    %v514 = vunpack.c.l.b16 %v259
    %v515 = vunpack.c.l.b16 %v260
    %v516 = vunpack.c.l.b16 %v261
    %v517 = vunpack.c.l.b16 %v262
    %v518 = vunpack.c.l.b16 %v263
    %v519 = vunpack.c.l.b16 %v264
    %v520 = vunpack.c.l.b16 %v265
    %v521 = vunpack.c.l.b16 %v266
    %v522 = vunpack.c.l.b16 %v267
    %v523 = vunpack.c.l.b16 %v268
    %v524 = vunpack.c.l.b16 %v269
    %v525 = vunpack.c.l.b16 %v270
    %v526 = vunpack.c.l.b16 %v271
    %v527 = vunpack.c.l.b16 %v272
    %v528 = vunpack.c.l.b16 %v273
    %v529 = vunpack.c.l.b16 %v274
    %v530 = vunpack.c.l.b16 %v275
    %v531 = vunpack.c.l.b16 %v276
    %v532 = vunpack.c.l.b16 %v277
    %v533 = vunpack.c.l.b16 %v278
    %v534 = vunpack.c.l.b16 %v279
    %v535 = vunpack.c.l.b16 %v280
    %v536 = vunpack.c.l.b16 %v281
    %v537 = vunpack.c.l.b16 %v282
    %v538 = vunpack.c.l.b16 %v283
    %v539 = vunpack.c.l.b16 %v284
    %v540 = vunpack.c.l.b16 %v285
    %v541 = vunpack.c.l.b16 %v286
    %v542 = vunpack.c.l.b16 %v287
    %v543 = vunpack.c.l.b16 %v288
    %v544 = vunpack.c.l.b16 %v289
    %v545 = vunpack.c.l.b16 %v290
    %v546 = vunpack.c.l.b16 %v291
    %v547 = vunpack.c.l.b16 %v292
    %v548 = vunpack.c.l.b16 %v293
    %v549 = vunpack.c.l.b16 %v294
    %v550 = vunpack.c.l.b16 %v295
    %v551 = vunpack.c.l.b16 %v296
    %v552 = vunpack.c.l.b16 %v297
    %v553 = vunpack.c.l.b16 %v298
    %v554 = vunpack.c.l.b16 %v299
    %v555 = vunpack.c.l.b16 %v300
    %v556 = vunpack.c.l.b16 %v301
    %v557 = vunpack.c.l.b16 %v302
    %v558 = vunpack.c.l.b16 %v303
    %v559 = vunpack.c.l.b16 %v304
    %v560 = vunpack.c.l.b16 %v305
    %v561 = vunpack.c.l.b16 %v306
    %v562 = vunpack.c.l.b16 %v307
    %v563 = vunpack.c.l.b16 %v308
    %v564 = vunpack.c.l.b16 %v309
    %v565 = vunpack.c.l.b16 %v310
    %v566 = vpack.c.b16 %v443, %v442
    %v567 = vpack.c.b16 %v445, %v444
    %v568 = vpack.c.b16 %v447, %v446
    %v569 = vpack.c.b16 %v449, %v448
    %v570 = vpack.c.b16 %v451, %v450
    %v571 = vpack.c.b16 %v453, %v452
    %v572 = vpack.c.b16 %v455, %v454
    %v573 = vpack.c.b16 %v457, %v456
    %v574 = vpack.c.b16 %v459, %v458
    %v575 = vpack.c.b16 %v461, %v460
    %v576 = vpack.c.b16 %v463, %v462
    %v577 = vpack.c.b16 %v465, %v464
    %v578 = vpack.c.b16 %v467, %v466
    %v579 = vpack.c.b16 %v469, %v468
    %v580 = vpack.c.b16 %v471, %v470
    %v581 = vpack.c.b16 %v473, %v472
    %v582 = vpack.c.b16 %v475, %v474
    %v583 = vpack.c.b16 %v477, %v476
    %v584 = vpack.c.b16 %v479, %v478
    %v585 = vpack.c.b16 %v481, %v480
    %v586 = vpack.c.b16 %v483, %v482
    %v587 = vpack.c.b16 %v485, %v484
    %v588 = vpack.c.b16 %v487, %v486
    %v589 = vpack.c.b16 %v489, %v488
    %v590 = vpack.c.b16 %v491, %v490
    %v591 = vpack.c.b16 %v493, %v492
    %v592 = vpack.c.b16 %v495, %v494
    %v593 = vpack.c.b16 %v497, %v496
    %v594 = vpack.c.b16 %v499, %v498
    %v595 = vpack.c.b16 %v501, %v500
    %v596 = vpack.c.b16 %v503, %v502
    %v597 = vpack.c.b16 %v505, %v504
    %v598 = vpack.c.b16 %v507, %v506
    %v599 = vpack.c.b16 %v509, %v508
    %v600 = vpack.c.b16 %v511, %v510
    %v601 = vpack.c.b16 %v513, %v512
    %v602 = vpack.c.b16 %v515, %v514
    %v603 = vpack.c.b16 %v517, %v516
    %v604 = vpack.c.b16 %v519, %v518
    %v605 = vpack.c.b16 %v521, %v520
    %v606 = vpack.c.b16 %v523, %v522
    %v607 = vpack.c.b16 %v525, %v524
    %v608 = vpack.c.b16 %v527, %v526
    %v609 = vpack.c.b16 %v529, %v528
    %v610 = vpack.c.b16 %v531, %v530
    %v611 = vpack.c.b16 %v533, %v532
    %v612 = vpack.c.b16 %v535, %v534
    %v613 = vpack.c.b16 %v537, %v536
    %v614 = vpack.c.b16 %v539, %v538
    %v615 = vpack.c.b16 %v541, %v540
    %v616 = vpack.c.b16 %v543, %v542
    %v617 = vpack.c.b16 %v545, %v544
    %v618 = vpack.c.b16 %v547, %v546
    %v619 = vpack.c.b16 %v549, %v548
    %v620 = vpack.c.b16 %v551, %v550
    %v621 = vpack.c.b16 %v553, %v552
    %v622 = vpack.c.b16 %v555, %v554
    %v623 = vpack.c.b16 %v557, %v556
    %v624 = vpack.c.b16 %v559, %v558
    %v625 = vpack.c.b16 %v561, %v560
    %v626 = vpack.c.b16 %v563, %v562
    %v627 = vpack.c.b16 %v565, %v564
    %vm689 = vcmask 752640
    %v691 = vsel %vm689, %v186, 0
    %vm693 = vcmask 1045504
    %v695 = vsel %vm693, %v627, 0
    %697 = vmatprep.subr.bf16.mxu0 0
    %698 = vmatpush1.bf16.msra.mxu0 %v566
    %699 = vmatprep.subr.bf16.mxu0 0
    %700 = vmatpush1.bf16.msra.mxu0 %v567
    %701 = vmatprep.subr.bf16.mxu0 0
    %702 = vmatpush1.bf16.msra.mxu0 %v568
    %703 = vmatprep.subr.bf16.mxu0 0
    %704 = vmatpush1.bf16.msra.mxu0 %v569
    %705 = vmatprep.subr.bf16.mxu0 0
    %706 = vmatpush1.bf16.msra.mxu0 %v570
    %707 = vmatprep.subr.bf16.mxu0 0
    %708 = vmatpush1.bf16.msra.mxu0 %v571
    %709 = vmatprep.subr.bf16.mxu0 0
    %710 = vmatpush1.bf16.msra.mxu0 %v572
    %711 = vmatprep.subr.bf16.mxu0 0
    %712 = vmatpush1.bf16.msra.mxu0 %v573
    %713 = vmatprep.subr.bf16.mxu0 0
    %714 = vmatpush1.bf16.msra.mxu0 %v574
    %715 = vmatprep.subr.bf16.mxu0 0
    %716 = vmatpush1.bf16.msra.mxu0 %v575
    %717 = vmatprep.subr.bf16.mxu0 0
    %718 = vmatpush1.bf16.msra.mxu0 %v576
    %719 = vmatprep.subr.bf16.mxu0 0
    %720 = vmatpush1.bf16.msra.mxu0 %v577
    %721 = vmatprep.subr.bf16.mxu0 0
    %722 = vmatpush1.bf16.msra.mxu0 %v578
    %723 = vmatprep.subr.bf16.mxu0 0
    %724 = vmatpush1.bf16.msra.mxu0 %v579
    %725 = vmatprep.subr.bf16.mxu0 0
    %726 = vmatpush1.bf16.msra.mxu0 %v580
    %727 = vmatprep.subr.bf16.mxu0 0
    %728 = vmatpush1.bf16.msra.mxu0 %v581
    %729 = vmatprep.mubr.bf16.mxu0 %v180
    %730 = vmatmul.mubr.bf16.gmra.mrb[0].mxu0 %v179
    %v731 = vpop.f32.mrb[0].mxu0
    %v732 = vadd.f32 %v316, %v731
    %v733 = vpop.f32.mrb[0].mxu0
    %v734 = vpop.f32.mrb[0].mxu0
    %v735 = vpop.f32.mrb[0].mxu0
    %736 = vdwg.mxu0
    %737 = vmatprep.subr.bf16.mxu0 0
    %738 = vmatpush1.bf16.msra.mxu0 %v582
    %739 = vmatprep.subr.bf16.mxu0 0
    %740 = vmatpush1.bf16.msra.mxu0 %v583
    %741 = vmatprep.subr.bf16.mxu0 0
    %742 = vmatpush1.bf16.msra.mxu0 %v584
    %743 = vmatprep.subr.bf16.mxu0 0
    %744 = vmatpush1.bf16.msra.mxu0 %v585
    %745 = vmatprep.subr.bf16.mxu0 0
    %746 = vmatpush1.bf16.msra.mxu0 %v586
    %747 = vmatprep.subr.bf16.mxu0 0
    %748 = vmatpush1.bf16.msra.mxu0 %v587
    %749 = vmatprep.subr.bf16.mxu0 0
    %750 = vmatpush1.bf16.msra.mxu0 %v588
    %751 = vmatprep.subr.bf16.mxu0 0
    %752 = vmatpush1.bf16.msra.mxu0 %v589
    %753 = vmatprep.subr.bf16.mxu0 0
    %754 = vmatpush1.bf16.msra.mxu0 %v590
    %755 = vmatprep.subr.bf16.mxu0 0
    %756 = vmatpush1.bf16.msra.mxu0 %v591
    %757 = vmatprep.subr.bf16.mxu0 0
    %758 = vmatpush1.bf16.msra.mxu0 %v592
    %759 = vmatprep.subr.bf16.mxu0 0
    %760 = vmatpush1.bf16.msra.mxu0 %v593
    %761 = vmatprep.subr.bf16.mxu0 0
    %762 = vmatpush1.bf16.msra.mxu0 %v594
    %763 = vmatprep.subr.bf16.mxu0 0
    %764 = vmatpush1.bf16.msra.mxu0 %v595
    %765 = vmatprep.subr.bf16.mxu0 0
    %766 = vmatpush1.bf16.msra.mxu0 %v596
    %767 = vmatprep.subr.bf16.mxu0 0
    %768 = vmatpush1.bf16.msra.mxu0 %v597
    %769 = vmatprep.mubr.bf16.mxu0 %v182
    %770 = vmatmul.mubr.bf16.gmra.mrb[0].mxu0 %v181
    %v771 = vpop.f32.mrb[0].mxu0
    %v772 = vadd.f32 %v732, %v771
    %v773 = vpop.f32.mrb[0].mxu0
    %v774 = vpop.f32.mrb[0].mxu0
    %v775 = vpop.f32.mrb[0].mxu0
    %776 = vdwg.mxu0
    %777 = vmatprep.subr.bf16.mxu0 0
    %778 = vmatpush1.bf16.msra.mxu0 %v598
    %779 = vmatprep.subr.bf16.mxu0 0
    %780 = vmatpush1.bf16.msra.mxu0 %v599
    %781 = vmatprep.subr.bf16.mxu0 0
    %782 = vmatpush1.bf16.msra.mxu0 %v600
    %783 = vmatprep.subr.bf16.mxu0 0
    %784 = vmatpush1.bf16.msra.mxu0 %v601
    %785 = vmatprep.subr.bf16.mxu0 0
    %786 = vmatpush1.bf16.msra.mxu0 %v602
    %787 = vmatprep.subr.bf16.mxu0 0
    %788 = vmatpush1.bf16.msra.mxu0 %v603
    %789 = vmatprep.subr.bf16.mxu0 0
    %790 = vmatpush1.bf16.msra.mxu0 %v604
    %791 = vmatprep.subr.bf16.mxu0 0
    %792 = vmatpush1.bf16.msra.mxu0 %v605
    %793 = vmatprep.subr.bf16.mxu0 0
    %794 = vmatpush1.bf16.msra.mxu0 %v606
    %795 = vmatprep.subr.bf16.mxu0 0
    %796 = vmatpush1.bf16.msra.mxu0 %v607
    %797 = vmatprep.subr.bf16.mxu0 0
    %798 = vmatpush1.bf16.msra.mxu0 %v608
    %799 = vmatprep.subr.bf16.mxu0 0
    %800 = vmatpush1.bf16.msra.mxu0 %v609
    %801 = vmatprep.subr.bf16.mxu0 0
    %802 = vmatpush1.bf16.msra.mxu0 %v610
    %803 = vmatprep.subr.bf16.mxu0 0
    %804 = vmatpush1.bf16.msra.mxu0 %v611
    %805 = vmatprep.subr.bf16.mxu0 0
    %806 = vmatpush1.bf16.msra.mxu0 %v612
    %807 = vmatprep.subr.bf16.mxu0 0
    %808 = vmatpush1.bf16.msra.mxu0 %v613
    %809 = vmatprep.mubr.bf16.mxu0 %v184
    %810 = vmatmul.mubr.bf16.gmra.mrb[0].mxu0 %v183
    %v811 = vpop.f32.mrb[0].mxu0
    %v812 = vadd.f32 %v772, %v811
    %v813 = vpop.f32.mrb[0].mxu0
    %v814 = vpop.f32.mrb[0].mxu0
    %v815 = vpop.f32.mrb[0].mxu0
    %816 = vdwg.mxu0
    %817 = vmatprep.subr.bf16.mxu0 0
    %818 = vmatpush1.bf16.msra.mxu0 %v614
    %819 = vmatprep.subr.bf16.mxu0 0
    %820 = vmatpush1.bf16.msra.mxu0 %v615
    %821 = vmatprep.subr.bf16.mxu0 0
    %822 = vmatpush1.bf16.msra.mxu0 %v616
    %823 = vmatprep.subr.bf16.mxu0 0
    %824 = vmatpush1.bf16.msra.mxu0 %v617
    %825 = vmatprep.subr.bf16.mxu0 0
    %826 = vmatpush1.bf16.msra.mxu0 %v618
    %827 = vmatprep.subr.bf16.mxu0 0
    %828 = vmatpush1.bf16.msra.mxu0 %v619
    %829 = vmatprep.subr.bf16.mxu0 0
    %830 = vmatpush1.bf16.msra.mxu0 %v620
    %831 = vmatprep.subr.bf16.mxu0 0
    %832 = vmatpush1.bf16.msra.mxu0 %v621
    %833 = vmatprep.subr.bf16.mxu0 0
    %834 = vmatpush1.bf16.msra.mxu0 %v622
    %835 = vmatprep.subr.bf16.mxu0 0
    %836 = vmatpush1.bf16.msra.mxu0 %v623
    %837 = vmatprep.subr.bf16.mxu0 0
    %838 = vmatpush1.bf16.msra.mxu0 %v624
    %839 = vmatprep.subr.bf16.mxu0 0
    %840 = vmatpush1.bf16.msra.mxu0 %v625
    %841 = vmatprep.subr.bf16.mxu0 0
    %842 = vmatpush1.bf16.msra.mxu0 %v626
    %843 = vmatprep.subr.bf16.mxu0 0
    %844 = vmatpush1.bf16.msra.mxu0 %v695
    %845 = vmatprep.subr.bf16.mxu0 0
    %846 = vmatpush1.bf16.msra.mxu0 0
    %847 = vmatprep.subr.bf16.mxu0 0
    %848 = vmatpush1.bf16.msra.mxu0 0
    %849 = vmatprep.mubr.bf16.mxu0 %v691
    %850 = vmatmul.mubr.bf16.gmra.mrb[0].mxu0 %v185
    %v851 = vpop.f32.mrb[0].mxu0
    %v852 = vadd.f32 %v812, %v851
    %v853 = vpop.f32.mrb[0].mxu0
    %v854 = vpop.f32.mrb[0].mxu0
    %v855 = vpop.f32.mrb[0].mxu0
    %856 = vdwg.mxu0
    %v857 = vmax.f32 %v852, 0.0
    %v858 = vpack.c.bf16 %v857, %v857
    %v859 = vld [vmem:[#allocation7] sm:$0xf]
    %v860 = vld [vmem:[#allocation7 + $0x4] sm:$0xf]
    %v861 = vld [vmem:[#allocation7 + $0x8] sm:$0xf]
    %v862 = vld [vmem:[#allocation7 + $0xc] sm:$0xf]
    %v863 = vld [vmem:[#allocation7 + $0x10] sm:$0xf]
    %v864 = vld [vmem:[#allocation7 + $0x14] sm:$0xf]
    %v865 = vld [vmem:[#allocation7 + $0x18] sm:$0xf]
    %v866 = vld [vmem:[#allocation7 + $0x1c] sm:$0xf]
    %v867 = vld [vmem:[#allocation7 + $0x20] sm:$0xf]
    %v868 = vld [vmem:[#allocation7 + $0x24] sm:$0xf]
    %v869 = vld [vmem:[#allocation7 + $0x28] sm:$0xf]
    %v870 = vld [vmem:[#allocation7 + $0x2c] sm:$0xf]
    %v871 = vld [vmem:[#allocation7 + $0x30] sm:$0xf]
    %v872 = vld [vmem:[#allocation7 + $0x34] sm:$0xf]
    %v873 = vld [vmem:[#allocation7 + $0x38] sm:$0xf]
    %v874 = vld [vmem:[#allocation7 + $0x3c] sm:$0xf]
    %v875 = vld [vmem:[%s4] sm:$0x1]
    %v877 = vlaneseq
    %v878 = vshrl.u32 %v877, 7
    %v879 = vsub.s32 0, %v878
    %v880 = vrot.slane %v875, %v879
    %v898 = vunpack.c.l.b16 %v859
    %v899 = vunpack.c.l.b16 %v860
    %v900 = vunpack.c.l.b16 %v861
    %v901 = vunpack.c.l.b16 %v862
    %v902 = vunpack.c.l.b16 %v863
    %v903 = vunpack.c.l.b16 %v864
    %v904 = vunpack.c.l.b16 %v865
    %v905 = vunpack.c.l.b16 %v866
    %v906 = vunpack.c.l.b16 %v867
    %v907 = vunpack.c.l.b16 %v868
    %v908 = vunpack.c.l.b16 %v869
    %v909 = vunpack.c.l.b16 %v870
    %v910 = vunpack.c.l.b16 %v871
    %v911 = vunpack.c.l.b16 %v872
    %v912 = vunpack.c.l.b16 %v873
    %v913 = vunpack.c.l.b16 %v874
    %v914 = vpack.c.b16 %v899, %v898
    %v915 = vpack.c.b16 %v901, %v900
    %v916 = vpack.c.b16 %v903, %v902
    %v917 = vpack.c.b16 %v905, %v904
    %v918 = vpack.c.b16 %v907, %v906
    %v919 = vpack.c.b16 %v909, %v908
    %v920 = vpack.c.b16 %v911, %v910
    %v921 = vpack.c.b16 %v913, %v912
    %930 = vmatprep.subr.bf16.mxu0 0
    %931 = vmatpush1.bf16.msra.mxu0 %v914
    %932 = vmatprep.subr.bf16.mxu0 0
    %933 = vmatpush1.bf16.msra.mxu0 %v915
    %934 = vmatprep.subr.bf16.mxu0 0
    %935 = vmatpush1.bf16.msra.mxu0 %v916
    %936 = vmatprep.subr.bf16.mxu0 0
    %937 = vmatpush1.bf16.msra.mxu0 %v917
    %938 = vmatprep.subr.bf16.mxu0 0
    %939 = vmatpush1.bf16.msra.mxu0 %v918
    %940 = vmatprep.subr.bf16.mxu0 0
    %941 = vmatpush1.bf16.msra.mxu0 %v919
    %942 = vmatprep.subr.bf16.mxu0 0
    %943 = vmatpush1.bf16.msra.mxu0 %v920
    %944 = vmatprep.subr.bf16.mxu0 0
    %945 = vmatpush1.bf16.msra.mxu0 %v921
    %946 = vmatprep.subr.bf16.mxu0 0
    %947 = vmatpush1.bf16.msra.mxu0 0
    %948 = vmatprep.subr.bf16.mxu0 0
    %949 = vmatpush1.bf16.msra.mxu0 0
    %950 = vmatprep.subr.bf16.mxu0 0
    %951 = vmatpush1.bf16.msra.mxu0 0
    %952 = vmatprep.subr.bf16.mxu0 0
    %953 = vmatpush1.bf16.msra.mxu0 0
    %954 = vmatprep.subr.bf16.mxu0 0
    %955 = vmatpush1.bf16.msra.mxu0 0
    %956 = vmatprep.subr.bf16.mxu0 0
    %957 = vmatpush1.bf16.msra.mxu0 0
    %958 = vmatprep.subr.bf16.mxu0 0
    %959 = vmatpush1.bf16.msra.mxu0 0
    %960 = vmatprep.subr.bf16.mxu0 0
    %961 = vmatpush1.bf16.msra.mxu0 0
    %962 = vmatprep.mubr.bf16.mxu0 0
    %963 = vmatmul.mubr.bf16.gmra.mrb[0].mxu0 %v858
    %v964 = vpop.f32.mrb[0].mxu0
    %v965 = vadd.f32 %v880, %v964
    %v966 = vpop.f32.mrb[0].mxu0
    %v967 = vpop.f32.mrb[0].mxu0
    %v968 = vpop.f32.mrb[0].mxu0
    %969 = vdwg.mxu0
    %v970 = vmax.f32 %v965, 0.0
    %v971 = vpack.c.bf16 %v970, %v970
    %v972 = vld [vmem:[#allocation8] sm:$0xf]
    %v973 = vld [vmem:[#allocation8 + $0x4] sm:$0xf]
    %v974 = vld [vmem:[#allocation8 + $0x8] sm:$0xf]
    %v975 = vld [vmem:[#allocation8 + $0xc] sm:$0xf]
    %v976 = vld [vmem:[#allocation8 + $0x10] sm:$0xf]
    %v977 = vld [vmem:[#allocation8 + $0x14] sm:$0xf]
    %v978 = vld [vmem:[#allocation8 + $0x18] sm:$0xf]
    %v979 = vld [vmem:[#allocation8 + $0x1c] sm:$0xf]
    %v980 = vld [vmem:[#allocation8 + $0x20] sm:$0xf]
    %v981 = vld [vmem:[#allocation8 + $0x24] sm:$0xf]
    %v982 = vld [vmem:[#allocation8 + $0x28] sm:$0xf]
    %v983 = vld [vmem:[#allocation8 + $0x2c] sm:$0xf]
    %v984 = vld [vmem:[#allocation8 + $0x30] sm:$0xf]
    %v985 = vld [vmem:[#allocation8 + $0x34] sm:$0xf]
    %v986 = vld [vmem:[#allocation8 + $0x38] sm:$0xf]
    %v987 = vld [vmem:[#allocation8 + $0x3c] sm:$0xf]
    %v988 = vld [vmem:[%s6] sm:$0x1]
    %v990 = vlaneseq
    %v991 = vshrl.u32 %v990, 7
    %v992 = vsub.s32 0, %v991
    %v993 = vrot.slane %v988, %v992
    %v1011 = vunpack.c.l.b16 %v972
    %v1012 = vunpack.c.l.b16 %v973
    %v1013 = vunpack.c.l.b16 %v974
    %v1014 = vunpack.c.l.b16 %v975
    %v1015 = vunpack.c.l.b16 %v976
    %v1016 = vunpack.c.l.b16 %v977
    %v1017 = vunpack.c.l.b16 %v978
    %v1018 = vunpack.c.l.b16 %v979
    %v1019 = vunpack.c.l.b16 %v980
    %v1020 = vunpack.c.l.b16 %v981
    %v1021 = vunpack.c.l.b16 %v982
    %v1022 = vunpack.c.l.b16 %v983
    %v1023 = vunpack.c.l.b16 %v984
    %v1024 = vunpack.c.l.b16 %v985
    %v1025 = vunpack.c.l.b16 %v986
    %v1026 = vunpack.c.l.b16 %v987
    %v1027 = vpack.c.b16 %v1012, %v1011
    %v1028 = vpack.c.b16 %v1014, %v1013
    %v1029 = vpack.c.b16 %v1016, %v1015
    %v1030 = vpack.c.b16 %v1018, %v1017
    %v1031 = vpack.c.b16 %v1020, %v1019
    %v1032 = vpack.c.b16 %v1022, %v1021
    %v1033 = vpack.c.b16 %v1024, %v1023
    %v1034 = vpack.c.b16 %v1026, %v1025
    %1043 = vmatprep.subr.bf16.mxu0 0
    %1044 = vmatpush1.bf16.msra.mxu0 %v1027
    %1045 = vmatprep.subr.bf16.mxu0 0
    %1046 = vmatpush1.bf16.msra.mxu0 %v1028
    %1047 = vmatprep.subr.bf16.mxu0 0
    %1048 = vmatpush1.bf16.msra.mxu0 %v1029
    %1049 = vmatprep.subr.bf16.mxu0 0
    %1050 = vmatpush1.bf16.msra.mxu0 %v1030
    %1051 = vmatprep.subr.bf16.mxu0 0
    %1052 = vmatpush1.bf16.msra.mxu0 %v1031
    %1053 = vmatprep.subr.bf16.mxu0 0
    %1054 = vmatpush1.bf16.msra.mxu0 %v1032
    %1055 = vmatprep.subr.bf16.mxu0 0
    %1056 = vmatpush1.bf16.msra.mxu0 %v1033
    %1057 = vmatprep.subr.bf16.mxu0 0
    %1058 = vmatpush1.bf16.msra.mxu0 %v1034
    %1059 = vmatprep.subr.bf16.mxu0 0
    %1060 = vmatpush1.bf16.msra.mxu0 0
    %1061 = vmatprep.subr.bf16.mxu0 0
    %1062 = vmatpush1.bf16.msra.mxu0 0
    %1063 = vmatprep.subr.bf16.mxu0 0
    %1064 = vmatpush1.bf16.msra.mxu0 0
    %1065 = vmatprep.subr.bf16.mxu0 0
    %1066 = vmatpush1.bf16.msra.mxu0 0
    %1067 = vmatprep.subr.bf16.mxu0 0
    %1068 = vmatpush1.bf16.msra.mxu0 0
    %1069 = vmatprep.subr.bf16.mxu0 0
    %1070 = vmatpush1.bf16.msra.mxu0 0
    %1071 = vmatprep.subr.bf16.mxu0 0
    %1072 = vmatpush1.bf16.msra.mxu0 0
    %1073 = vmatprep.subr.bf16.mxu0 0
    %1074 = vmatpush1.bf16.msra.mxu0 0
    %1075 = vmatprep.mubr.bf16.mxu0 0
    %1076 = vmatmul.mubr.bf16.gmra.mrb[0].mxu0 %v971
    %v1077 = vpop.f32.mrb[0].mxu0
    %v1078 = vadd.f32 %v993, %v1077
    %v1079 = vpop.f32.mrb[0].mxu0
    %v1080 = vpop.f32.mrb[0].mxu0
    %v1081 = vpop.f32.mrb[0].mxu0
    %1082 = vdwg.mxu0
    %v1083 = vpack.c.bf16 %v1078, %v1078
    %v1086 = vunpack.c.l.s4 1966171168
    %v1087 = vunpack.c.0.s8 %v1086
    %v1088 = vlaneseq
    %v1089 = vshrl.u32 %v1088, 7
    %v1090 = vsub.s32 %v1087, %v1089
    %v1091 = vrot.slane %v1083, %v1090
    %v1092 = vcombine.high %v1091, %v1091
    %v1094 = vunpack.c.l.s4 1966171168
    %v1095 = vunpack.c.0.s8 %v1094
    %v1096 = vlaneseq
    %v1097 = vshrl.u32 %v1096, 7
    %v1098 = vsub.s32 %v1095, %v1097
    %v1099 = vrot.slane %v1091, %v1098
    %v1101 = vunpack.c.l.s4 1966171168
    %v1102 = vunpack.c.0.s8 %v1101
    %v1103 = vlaneseq
    %v1104 = vshrl.u32 %v1103, 7
    %v1105 = vsub.s32 %v1102, %v1104
    %v1106 = vrot.slane %v1092, %v1105
    %v1107 = vcombine.high %v1099, %v1099
    %v1108 = vcombine.high %v1106, %v1106
    %1113 = vst [vmem:[#allocation10] sm:$0x1] %v1099
    %1114 = vst [vmem:[#allocation10 + $0x1] sm:$0x1] %v1106
    %1115 = vst [vmem:[#allocation10 + $0x2] sm:$0x1] %v1107
    %1116 = vst [vmem:[#allocation10 + $0x3] sm:$0x1] %v1108
    // Predicated region
    $region46: #{tpu_custom_call.1} parent=1 // pred_check
      _
    $region47: #{tpu_custom_call.1} parent=1 // pred_check_branch
      %1118 = sbr.rel (0) target = $region49
    $region48: #{tpu_custom_call.1} parent=1 // pred_region
      %s1120 = ssub.s32 64, 16
      %1121 = vsyncadd [#allocation4], %s1120
      %s1122 = sshll.u32 [#allocation10], 4
      %s1123 = int_to_ptr.vmem [resolvable:$true] %s1122
      %1128 = dma.vmem_to_hbm [thread:$0]  %s1123, 16, %s7, [#allocation4], 16, 16, 1
    $region49: #{tpu_custom_call.1} parent=1 // pred_fallthru
      _
    // Predicated region
    $region50: #{tpu_custom_call.1} parent=1 // pred_check
      _
    $region51: #{tpu_custom_call.1} parent=1 // pred_check_branch
      %1130 = sbr.rel (0) target = $region53
    $region52: #{tpu_custom_call.1} parent=1 // pred_region
      %1131 = dma.done [#allocation4], 64
    $region53: #{tpu_custom_call.1} parent=1 // pred_fallthru
      _
    %1132 = vsyncpa [#allocation3], 1
    %1133 = vsyncpa [#allocation6], 1
    %1134 = vsyncpa [#allocation9], 1
    %1135 = vsyncpa [#allocation4], 1

</llo_original>
